<compile_context>
chip_gen: v7x
topology: tpu7x:2x2x1
jax: 0.10.0
libtpu: 0.0.40
codegen_flags: <defaults>
</compile_context>

<pallas_src>
import functools

import jax
import jax.numpy as jnp
from jax import lax
from jax.experimental import pallas as pl
from jax.experimental.pallas import tpu as pltpu


_VMEM_LIMIT = 32 * 1024 * 1024  # explicit scoped-VMEM budget, safe on v5e/v6e/v7x


def _round_up(n, m):
    return ((n + m - 1) // m) * m


# ---------------------------------------------------------------------------
# Linear kernel (row-tiled, bf16 MXU inputs, f32 epilogue)
# ---------------------------------------------------------------------------
def _linear_kernel(x_ref, w_ref, b_ref, o_ref, *, relu):
    y = jnp.dot(x_ref[...].astype(jnp.bfloat16), w_ref[...],
                preferred_element_type=jnp.float32) + b_ref[...]
    if relu:
        y = jnp.maximum(y, 0.0)
    o_ref[...] = y.astype(o_ref.dtype)


def linear_pallas(x2d, w_bf16, b_row, relu=False, tile_m=512):
    """y = relu?(x @ w + b).  x2d: (M, K) f32, w: (K, F) bf16, b: (1, F) f32.

    Row-tiled over M so large batches stream through VMEM (double-buffered by the
    BlockSpec pipeline); the tiny demo shapes collapse to a single block."""
    M, K = x2d.shape
    F = w_bf16.shape[1]
    tm = tile_m if (M > tile_m and M % tile_m == 0) else M
    return pl.pallas_call(
        functools.partial(_linear_kernel, relu=relu),
        out_shape=jax.ShapeDtypeStruct((M, F), jnp.float32),
        grid=(M // tm,),
        in_specs=[
            pl.BlockSpec((tm, K), lambda i: (i, 0)),
            pl.BlockSpec((K, F), lambda i: (0, 0)),
            pl.BlockSpec((1, F), lambda i: (0, 0)),
        ],
        out_specs=pl.BlockSpec((tm, F), lambda i: (i, 0)),
        compiler_params=pltpu.CompilerParams(
            dimension_semantics=("parallel",),
            vmem_limit_bytes=_VMEM_LIMIT),
    )(x2d, w_bf16, b_row)


# ---------------------------------------------------------------------------
# Biaffine kernels
# ---------------------------------------------------------------------------
def prep_biaffine_weights(weight, bias):
    """One-time prep for the decomposed biaffine kernel.

    weight: (d1+1, out, d2+1) -- torch PairwiseBilinear layout; bias: (out,).
    Bias is folded exactly into the [d1, o, d2] corner (the 1*W*1 term).
    Returns:
      w1: (d1, out*d2 + out) bf16  = [ W[:d1,o,:d2] flattened | W[:d1,o,d2] ]
      v : (out, d2)          bf16  =   W[d1,o,:d2]
      c : (out, 1)           f32   =   W[d1,o,d2] + bias[o]
    """
    d1a, n_out, d2a = weight.shape
    d1, d2 = d1a - 1, d2a - 1
    wf = weight.at[d1, :, d2].add(bias)
    w_main = wf[:d1, :, :d2].reshape(d1, n_out * d2)   # row-major: [p, o*d2+q]
    u = wf[:d1, :, d2]                                 # (d1, out)
    w1 = jnp.concatenate([w_main, u], axis=1).astype(jnp.bfloat16)
    v = wf[d1, :, :d2].astype(jnp.bfloat16)
    c = wf[d1, :, d2].reshape(n_out, 1).astype(jnp.float32)
    return w1, v, c


def _biaffine_block(x1, x2, w1, v, c, out_ref):
    """One batch:  out[o, i, j] = [x1_i, 1] @ W_o @ [x2_j, 1]^T   (bias folded in).

    x1: (n1, d1) bf16, x2: (n_pad, d2) bf16 (rows >= n2 are zero padding for
    lane-dense stores).  All matmuls contract over d1/d2 (no d+1 augmentation)."""
    n_out, d2 = v.shape
    nt = (((1,), (1,)), ((), ()))   # contract last dims of both operands (no XLU transpose)

    tu = jnp.dot(x1, w1, preferred_element_type=jnp.float32)   # (n1, n_out*d2 + n_out)
    a = tu[:, n_out * d2:]                                     # (n1, n_out): x1-side linear term
    s = lax.dot_general(v, x2, nt,
                        preferred_element_type=jnp.float32) + c  # (n_out, n_pad): x2-side + const
    t = tu[:, :n_out * d2].astype(jnp.bfloat16)
    for o in range(n_out):                                     # static unroll; n_out is small
        y = lax.dot_general(t[:, o * d2:(o + 1) * d2], x2, nt,
                            preferred_element_type=jnp.float32)  # (n1, n_pad)
        out_ref[o, :, :] = y + a[:, o:o + 1] + s[o:o + 1, :]


def _biaffine_kernel(x1_ref, x2_ref, w1_ref, v_ref, c_ref, o_ref):
    _biaffine_block(x1_ref[...].astype(jnp.bfloat16), x2_ref[...].astype(jnp.bfloat16),
                    w1_ref[...], v_ref[...], c_ref[...], o_ref)


def _dual_biaffine_kernel(x1e_ref, x2e_ref, x1l_ref, x2l_ref,
                          w1h_ref, vh_ref, ch_ref, w1d_ref, vd_ref, cd_ref,
                          head_ref, dep_ref):
    # Head (OUT=1) and deprel (OUT=C) biaffines fused in one grid step per batch.
    _biaffine_block(x1e_ref[...].astype(jnp.bfloat16), x2e_ref[...].astype(jnp.bfloat16),
                    w1h_ref[...], vh_ref[...], ch_ref[...], head_ref)
    _biaffine_block(x1l_ref[...].astype(jnp.bfloat16), x2l_ref[...].astype(jnp.bfloat16),
                    w1d_ref[...], vd_ref[...], cd_ref[...], dep_ref)


def _rep_spec(shape):
    # Operand replicated across the (batch,) grid.
    return pl.BlockSpec(shape, lambda b, _n=len(shape): (0,) * _n)


def biaffine_pallas(x1, x2, weight, bias):
    """Pallas TPU version of torch `Biaffine.forward` (PairwiseBilinear on
    ones-augmented inputs):
        y[b, i, j, o] = [x1[b,i], 1] @ weight[:, o, :] @ [x2[b,j], 1]^T + bias[o]
    x1: (B, n1, d1), x2: (B, n2, d2), weight: (d1+1, out, d2+1), bias: (out,).
    Returns (B, n1, n2, out) float32."""
    B, n1, d1 = x1.shape
    _, n2, d2 = x2.shape
    n_out = bias.shape[0]
    w1, v, c = prep_biaffine_weights(weight, bias)   # hoist to init time if called repeatedly
    n_pad = _round_up(n2, 128)                       # lane-dense output stores
    x2p = jnp.pad(x2, ((0, 0), (0, n_pad - n2), (0, 0)))

    y = pl.pallas_call(
        _biaffine_kernel,
        out_shape=jax.ShapeDtypeStruct((B, n_out, n1, n_pad), jnp.float32),
        grid=(B,),
        in_specs=[
            pl.BlockSpec((None, n1, d1), lambda b: (b, 0, 0)),
            pl.BlockSpec((None, n_pad, d2), lambda b: (b, 0, 0)),
            _rep_spec(w1.shape), _rep_spec(v.shape), _rep_spec(c.shape),
        ],
        out_specs=pl.BlockSpec((None, n_out, n1, n_pad), lambda b: (b, 0, 0, 0)),
        compiler_params=pltpu.CompilerParams(
            dimension_semantics=("parallel",),
            vmem_limit_bytes=_VMEM_LIMIT),
    )(x1, x2p, w1, v, c)
    return jnp.transpose(y[:, :, :, :n2], (0, 2, 3, 1))


def dual_biaffine_pallas(x1e, x2e, x1l, x2l, head_w, dep_w):
    """Both parser biaffines (head + deprel) in ONE pallas_call, grid=(batch,)."""
    B, n1, d1 = x1e.shape
    n2 = x2e.shape[1]
    w1h, vh, ch = head_w
    w1d, vd, cd = dep_w
    nh, d2 = vh.shape
    nd = vd.shape[0]
    n_pad = _round_up(n2, 128)
    pad = ((0, 0), (0, n_pad - n2), (0, 0))
    x2e_p = jnp.pad(x2e, pad)
    x2l_p = jnp.pad(x2l, pad)

    head, dep = pl.pallas_call(
        _dual_biaffine_kernel,
        out_shape=(jax.ShapeDtypeStruct((B, nh, n1, n_pad), jnp.float32),
                   jax.ShapeDtypeStruct((B, nd, n1, n_pad), jnp.float32)),
        grid=(B,),
        in_specs=[
            pl.BlockSpec((None, n1, d1), lambda b: (b, 0, 0)),
            pl.BlockSpec((None, n_pad, d2), lambda b: (b, 0, 0)),
            pl.BlockSpec((None, n1, d1), lambda b: (b, 0, 0)),
            pl.BlockSpec((None, n_pad, d2), lambda b: (b, 0, 0)),
            _rep_spec(w1h.shape), _rep_spec(vh.shape), _rep_spec(ch.shape),
            _rep_spec(w1d.shape), _rep_spec(vd.shape), _rep_spec(cd.shape),
        ],
        out_specs=(
            pl.BlockSpec((None, nh, n1, n_pad), lambda b: (b, 0, 0, 0)),
            pl.BlockSpec((None, nd, n1, n_pad), lambda b: (b, 0, 0, 0)),
        ),
        compiler_params=pltpu.CompilerParams(
            dimension_semantics=("parallel",),           # batch axis -> both v7x TensorCores
            vmem_limit_bytes=_VMEM_LIMIT),
    )(x1e, x2e_p, x1l, x2l_p, w1h, vh, ch, w1d, vd, cd)

    logits_head = head[:, 0, :, :n2]                               # (B, n1, n2)
    logits_deprel = jnp.transpose(dep[:, :, :, :n2], (0, 2, 3, 1))  # (B, n1, n2, OUT)
    return logits_head, logits_deprel


# ---------------------------------------------------------------------------
# Parameters, one-time preprocessing, forward
# ---------------------------------------------------------------------------
MLP_ORDER = ("mlp_src_edge", "mlp_trg_edge", "mlp_src_label", "mlp_trg_label")


def init_params(key, vocab, in_dim, out_dim, n_deprel):
    ks = jax.random.split(key, 16)

    def lin(kw, kb, fin, fout):
        bound = 1.0 / (fin ** 0.5)
        w = jax.random.uniform(kw, (fin, fout), jnp.float32, -bound, bound)
        b = jax.random.uniform(kb, (fout,), jnp.float32, -bound, bound)
        return w, b

    def biaf(kw, kb, d1, d2, out):
        # NOTE: torch Biaffine zero-initialises weight & bias; small random values
        # are used here so the kernels do non-trivial, checkable work.
        bound = 1.0 / ((d1 + 1) ** 0.5)
        w = jax.random.uniform(kw, (d1 + 1, out, d2 + 1), jnp.float32, -bound, bound)
        b = jax.random.uniform(kb, (out,), jnp.float32, -bound, bound)
        return w, b

    return {
        "emb": jax.random.normal(ks[0], (vocab, in_dim), jnp.float32),
        "fnn": lin(ks[1], ks[2], in_dim, in_dim),
        "mlp_src_edge": lin(ks[3], ks[4], in_dim, out_dim),
        "mlp_trg_edge": lin(ks[5], ks[6], in_dim, out_dim),
        "mlp_src_label": lin(ks[7], ks[8], in_dim, out_dim),
        "mlp_trg_label": lin(ks[9], ks[10], in_dim, out_dim),
        "biaf_head": biaf(ks[11], ks[12], out_dim, out_dim, 1),
        "biaf_deprel": biaf(ks[13], ks[14], out_dim, out_dim, n_deprel),
    }


def preprocess_params(params):
    """One-time inference prep (hoisted out of the forward hot path):
    fuse the 4 MLP weights into one lane-dense (in_dim, 4*out_dim) matrix, fold the
    biaffine biases into the weights, decompose away the ones-augmentation, and cast
    all MXU operands to bf16 (f32 accumulate stays inside the kernels)."""
    fw, fb = params["fnn"]
    mw = jnp.concatenate([params[k][0] for k in MLP_ORDER], axis=1)
    mb = jnp.concatenate([params[k][1] for k in MLP_ORDER], axis=0)
    return {
        "emb": params["emb"],
        "fnn_w": fw.astype(jnp.bfloat16),
        "fnn_b": fb.reshape(1, -1),
        "mlp_w": mw.astype(jnp.bfloat16),
        "mlp_b": mb.reshape(1, -1),
        "biaf_head": prep_biaffine_weights(*params["biaf_head"]),
        "biaf_deprel": prep_biaffine_weights(*params["biaf_deprel"]),
    }


def baseline_parser_forward(prep, input_ids, attention_mask):
    B, S = input_ids.shape
    # TODO(synk): the external pretrained transformer encoder has no in-script
    # definition; replaced by a deterministic embedding lookup producing
    # last_hidden_state-shaped activations.
    r_s = prep["emb"][input_ids]                               # (B, S, in_dim)

    # r_root = fnn(masked mean over real tokens)
    m = attention_mask.astype(r_s.dtype)[..., None]
    r_mean = (r_s * m).sum(axis=1) / jnp.maximum(m.sum(axis=1), 1.0)
    r_root = linear_pallas(r_mean, prep["fnn_w"], prep["fnn_b"], relu=False)

    # R = cat([r_root, r_s], dim=1); the 4 MLP heads run as ONE fused lane-dense
    # (4*out_dim = 128 wide) linear+ReLU.  Dropout(0.2) is identity in eval mode.
    R = jnp.concatenate([r_root[:, None, :], r_s], axis=1)     # (B, S+1, in_dim)
    N = S + 1
    H = linear_pallas(R.reshape(B * N, -1), prep["mlp_w"], prep["mlp_b"], relu=True)
    H = H.reshape(B, N, -1)
    D = H.shape[-1] // 4
    h_edge_parent = H[..., 0 * D:1 * D]
    h_edge_child = H[..., 1 * D:2 * D]
    h_label_parent = H[..., 2 * D:3 * D]
    h_label_child = H[..., 3 * D:4 * D]

    logits_head, logits_deprel = dual_biaffine_pallas(
        h_edge_parent, h_edge_child, h_label_parent, h_label_child,
        prep["biaf_head"], prep["biaf_deprel"])
    return {"logits_head": logits_head, "logits_deprel": logits_deprel}


# ---------------------------------------------------------------------------
# Pure-JAX f32 reference (mirrors the torch modules) + checks
# ---------------------------------------------------------------------------
def reference_forward(params, input_ids, attention_mask):
    r_s = params["emb"][input_ids]
    m = attention_mask.astype(jnp.float32)[..., None]
    r_mean = (r_s * m).sum(axis=1) / jnp.maximum(m.sum(axis=1), 1.0)
    fw, fb = params["fnn"]
    r_root = r_mean @ fw + fb
    R = jnp.concatenate([r_root[:, None, :], r_s], axis=1)

    def mlp(name):
        w, b = params[name]
        return jax.nn.relu(R @ w + b)

    def biaffine_ref(x1, x2, weight, bias):
        ones = jnp.ones(x1.shape[:-1] + (1,), x1.dtype)
        x1a = jnp.concatenate([x1, ones], axis=-1)
        x2a = jnp.concatenate([x2, ones], axis=-1)
        return jnp.einsum("bip,poq,bjq->bijo", x1a, weight, x2a,
                          precision="highest") + bias

    head = biaffine_ref(mlp("mlp_src_edge"), mlp("mlp_trg_edge"), *params["biaf_head"])
    deprel = biaffine_ref(mlp("mlp_src_label"), mlp("mlp_trg_label"), *params["biaf_deprel"])
    return {"logits_head": head[..., 0], "logits_deprel": deprel}


def _assert_close(name, got, ref, tol):
    # bf16 MXU inputs give small drift vs the f32 reference; scale-relative check.
    err = float(jnp.max(jnp.abs(got - ref)) / (jnp.max(jnp.abs(ref)) + 1e-6))
    assert err < tol, f"{name}: relative error {err:.4f} >= {tol}"


if __name__ == "__main__":
    B, S = 2, 8
    in_dim, out_dim, n_deprel, vocab = 32, 32, 8, 50

    key = jax.random.PRNGKey(0)
    kp, kid, kx1, kx2 = jax.random.split(key, 4)
    params = init_params(kp, vocab, in_dim, out_dim, n_deprel)
    prep = preprocess_params(params)

    input_ids = jax.random.randint(kid, (B, S), 0, vocab, dtype=jnp.int32)
    attention_mask = jnp.ones((B, S), dtype=jnp.int32)

    # --- standalone check of the spec module (Biaffine / PairwiseBilinear) ---
    x1 = jax.random.normal(kx1, (B, S, out_dim), jnp.float32)
    x2 = jax.random.normal(kx2, (B, S, out_dim), jnp.float32)
    w_b, b_b = params["biaf_deprel"]
    y = biaffine_pallas(x1, x2, w_b, b_b)
    jax.block_until_ready(y)
    ones = jnp.ones((B, S, 1), jnp.float32)
    y_ref = jnp.einsum("bip,poq,bjq->bijo",
                       jnp.concatenate([x1, ones], -1), w_b,
                       jnp.concatenate([x2, ones], -1), precision="highest") + b_b
    assert y.shape == (B, S, S, n_deprel)
    _assert_close("biaffine", y, y_ref, tol=0.05)

    # --- full parser forward (fused MLP linear + fused dual biaffine) ---
    out = baseline_parser_forward(prep, input_ids, attention_mask)
    jax.block_until_ready(out)
    ref = reference_forward(params, input_ids, attention_mask)

    assert out["logits_head"].shape == (B, S + 1, S + 1)
    assert out["logits_deprel"].shape == (B, S + 1, S + 1, n_deprel)
    _assert_close("logits_head", out["logits_head"], ref["logits_head"], tol=0.08)
    _assert_close("logits_deprel", out["logits_deprel"], ref["logits_deprel"], tol=0.08)

    print("KERNEL_OK")
</pallas_src>

<mosaic_0001>
module attributes {stable_mosaic.version = 11 : i64} {
  func.func @_biaffine_kernel(%arg0: i32, %arg1: memref<1x8x32xf32, #tpu.memory_space<vmem>>, %arg2: memref<1x128x32xf32, #tpu.memory_space<vmem>>, %arg3: memref<32x264xbf16, #tpu.memory_space<vmem>>, %arg4: memref<8x32xbf16, #tpu.memory_space<vmem>>, %arg5: memref<8x1xf32, #tpu.memory_space<vmem>>, %arg6: memref<1x8x8x128xf32, #tpu.memory_space<vmem>>) attributes {dimension_semantics = [#tpu.dimension_semantics<parallel>], iteration_bounds = array<i64: 2>, scalar_prefetch = 0 : i64, scratch_operands = 0 : i64, tpu.core_type = #tpu.core_type<tc>, window_params = [{transform_indices = @transform_0, window_bounds = array<i64: 1, 8, 32>}, {transform_indices = @transform_1, window_bounds = array<i64: 1, 128, 32>}, {pipeline_mode = #tpu.pipeline_mode<synchronous>, transform_indices = @transform_2, window_bounds = array<i64: 32, 264>}, {pipeline_mode = #tpu.pipeline_mode<synchronous>, transform_indices = @transform_3, window_bounds = array<i64: 8, 32>}, {pipeline_mode = #tpu.pipeline_mode<synchronous>, transform_indices = @transform_4, window_bounds = array<i64: 8, 1>}, {transform_indices = @transform_5, window_bounds = array<i64: 1, 8, 8, 128>}]} {
    %c0 = arith.constant 0 : index
    %c0_0 = arith.constant 0 : index
    %c0_1 = arith.constant 0 : index
    %0 = vector.load %arg1[%c0, %c0_0, %c0_1] : memref<1x8x32xf32, #tpu.memory_space<vmem>>, vector<1x8x32xf32>
    %1 = vector.shape_cast %0 : vector<1x8x32xf32> to vector<8x32xf32>
    %2 = arith.truncf %1 : vector<8x32xf32> to vector<8x32xbf16>
    %c0_2 = arith.constant 0 : index
    %c0_3 = arith.constant 0 : index
    %c0_4 = arith.constant 0 : index
    %3 = vector.load %arg2[%c0_2, %c0_3, %c0_4] : memref<1x128x32xf32, #tpu.memory_space<vmem>>, vector<1x128x32xf32>
    %4 = vector.shape_cast %3 : vector<1x128x32xf32> to vector<128x32xf32>
    %5 = arith.truncf %4 : vector<128x32xf32> to vector<128x32xbf16>
    %c0_5 = arith.constant 0 : index
    %c0_6 = arith.constant 0 : index
    %6 = vector.load %arg3[%c0_5, %c0_6] : memref<32x264xbf16, #tpu.memory_space<vmem>>, vector<32x264xbf16>
    %c0_7 = arith.constant 0 : index
    %c0_8 = arith.constant 0 : index
    %7 = vector.load %arg4[%c0_7, %c0_8] : memref<8x32xbf16, #tpu.memory_space<vmem>>, vector<8x32xbf16>
    %c0_9 = arith.constant 0 : index
    %c0_10 = arith.constant 0 : index
    %8 = vector.load %arg5[%c0_9, %c0_10] : memref<8x1xf32, #tpu.memory_space<vmem>>, vector<8x1xf32>
    %cst = arith.constant dense<0.000000e+00> : vector<8x264xf32>
    %9 = tpu.matmul %2, %6, %cst {dimension_numbers = #tpu.dot_dimension_numbers<[1], [0], [0], [1], [0, 0, 1, 1], [], []>} : vector<8x32xbf16>, vector<32x264xbf16>, vector<8x264xf32> -> vector<8x264xf32>
    %10 = vector.extract_strided_slice %9 {offsets = [0, 256], sizes = [8, 8], strides = [1, 1]} : vector<8x264xf32> to vector<8x8xf32>
    %cst_11 = arith.constant dense<0.000000e+00> : vector<8x128xf32>
    %11 = tpu.matmul %7, %5, %cst_11 {dimension_numbers = #tpu.dot_dimension_numbers<[1], [1], [0], [0], [0, 0, 1, 0], [], []>} : vector<8x32xbf16>, vector<128x32xbf16>, vector<8x128xf32> -> vector<8x128xf32>
    %12 = vector.broadcast %8 : vector<8x1xf32> to vector<8x128xf32>
    %13 = arith.addf %11, %12 : vector<8x128xf32>
    %14 = vector.extract_strided_slice %9 {offsets = [0, 0], sizes = [8, 256], strides = [1, 1]} : vector<8x264xf32> to vector<8x256xf32>
    %15 = arith.truncf %14 : vector<8x256xf32> to vector<8x256xbf16>
    %16 = vector.extract_strided_slice %15 {offsets = [0, 0], sizes = [8, 32], strides = [1, 1]} : vector<8x256xbf16> to vector<8x32xbf16>
    %cst_12 = arith.constant dense<0.000000e+00> : vector<8x128xf32>
    %17 = tpu.matmul %16, %5, %cst_12 {dimension_numbers = #tpu.dot_dimension_numbers<[1], [1], [0], [0], [0, 0, 1, 0], [], []>} : vector<8x32xbf16>, vector<128x32xbf16>, vector<8x128xf32> -> vector<8x128xf32>
    %18 = vector.extract_strided_slice %10 {offsets = [0, 0], sizes = [8, 1], strides = [1, 1]} : vector<8x8xf32> to vector<8x1xf32>
    %19 = vector.broadcast %18 : vector<8x1xf32> to vector<8x128xf32>
    %20 = arith.addf %17, %19 : vector<8x128xf32>
    %21 = vector.extract_strided_slice %13 {offsets = [0, 0], sizes = [1, 128], strides = [1, 1]} : vector<8x128xf32> to vector<1x128xf32>
    %22 = vector.broadcast %21 : vector<1x128xf32> to vector<8x128xf32>
    %23 = arith.addf %20, %22 : vector<8x128xf32>
    %c0_13 = arith.constant 0 : index
    %c0_14 = arith.constant 0 : index
    %c0_15 = arith.constant 0 : index
    %c0_16 = arith.constant 0 : index
    %24 = vector.load %arg6[%c0_13, %c0_14, %c0_15, %c0_16] : memref<1x8x8x128xf32, #tpu.memory_space<vmem>>, vector<1x1x8x128xf32>
    %25 = vector.shape_cast %24 : vector<1x1x8x128xf32> to vector<8x128xf32>
    %26 = vector.shape_cast %23 : vector<8x128xf32> to vector<1x1x8x128xf32>
    tpu.vector_store %arg6[%c0_13, %c0_14, %c0_15, %c0_16], %26 {strides = array<i32>} : memref<1x8x8x128xf32, #tpu.memory_space<vmem>>, vector<1x1x8x128xf32>,
    %27 = vector.extract_strided_slice %15 {offsets = [0, 32], sizes = [8, 32], strides = [1, 1]} : vector<8x256xbf16> to vector<8x32xbf16>
    %cst_17 = arith.constant dense<0.000000e+00> : vector<8x128xf32>
    %28 = tpu.matmul %27, %5, %cst_17 {dimension_numbers = #tpu.dot_dimension_numbers<[1], [1], [0], [0], [0, 0, 1, 0], [], []>} : vector<8x32xbf16>, vector<128x32xbf16>, vector<8x128xf32> -> vector<8x128xf32>
    %29 = vector.extract_strided_slice %10 {offsets = [0, 1], sizes = [8, 1], strides = [1, 1]} : vector<8x8xf32> to vector<8x1xf32>
    %30 = vector.broadcast %29 : vector<8x1xf32> to vector<8x128xf32>
    %31 = arith.addf %28, %30 : vector<8x128xf32>
    %32 = vector.extract_strided_slice %13 {offsets = [1, 0], sizes = [1, 128], strides = [1, 1]} : vector<8x128xf32> to vector<1x128xf32>
    %33 = vector.broadcast %32 : vector<1x128xf32> to vector<8x128xf32>
    %34 = arith.addf %31, %33 : vector<8x128xf32>
    %c0_18 = arith.constant 0 : index
    %c1 = arith.constant 1 : index
    %c0_19 = arith.constant 0 : index
    %c0_20 = arith.constant 0 : index
    %35 = vector.load %arg6[%c0_18, %c1, %c0_19, %c0_20] : memref<1x8x8x128xf32, #tpu.memory_space<vmem>>, vector<1x1x8x128xf32>
    %36 = vector.shape_cast %35 : vector<1x1x8x128xf32> to vector<8x128xf32>
    %37 = vector.shape_cast %34 : vector<8x128xf32> to vector<1x1x8x128xf32>
    tpu.vector_store %arg6[%c0_18, %c1, %c0_19, %c0_20], %37 {strides = array<i32>} : memref<1x8x8x128xf32, #tpu.memory_space<vmem>>, vector<1x1x8x128xf32>,
    %38 = vector.extract_strided_slice %15 {offsets = [0, 64], sizes = [8, 32], strides = [1, 1]} : vector<8x256xbf16> to vector<8x32xbf16>
    %cst_21 = arith.constant dense<0.000000e+00> : vector<8x128xf32>
    %39 = tpu.matmul %38, %5, %cst_21 {dimension_numbers = #tpu.dot_dimension_numbers<[1], [1], [0], [0], [0, 0, 1, 0], [], []>} : vector<8x32xbf16>, vector<128x32xbf16>, vector<8x128xf32> -> vector<8x128xf32>
    %40 = vector.extract_strided_slice %10 {offsets = [0, 2], sizes = [8, 1], strides = [1, 1]} : vector<8x8xf32> to vector<8x1xf32>
    %41 = vector.broadcast %40 : vector<8x1xf32> to vector<8x128xf32>
    %42 = arith.addf %39, %41 : vector<8x128xf32>
    %43 = vector.extract_strided_slice %13 {offsets = [2, 0], sizes = [1, 128], strides = [1, 1]} : vector<8x128xf32> to vector<1x128xf32>
    %44 = vector.broadcast %43 : vector<1x128xf32> to vector<8x128xf32>
    %45 = arith.addf %42, %44 : vector<8x128xf32>
    %c0_22 = arith.constant 0 : index
    %c2 = arith.constant 2 : index
    %c0_23 = arith.constant 0 : index
    %c0_24 = arith.constant 0 : index
    %46 = vector.load %arg6[%c0_22, %c2, %c0_23, %c0_24] : memref<1x8x8x128xf32, #tpu.memory_space<vmem>>, vector<1x1x8x128xf32>
    %47 = vector.shape_cast %46 : vector<1x1x8x128xf32> to vector<8x128xf32>
    %48 = vector.shape_cast %45 : vector<8x128xf32> to vector<1x1x8x128xf32>
    tpu.vector_store %arg6[%c0_22, %c2, %c0_23, %c0_24], %48 {strides = array<i32>} : memref<1x8x8x128xf32, #tpu.memory_space<vmem>>, vector<1x1x8x128xf32>,
    %49 = vector.extract_strided_slice %15 {offsets = [0, 96], sizes = [8, 32], strides = [1, 1]} : vector<8x256xbf16> to vector<8x32xbf16>
    %cst_25 = arith.constant dense<0.000000e+00> : vector<8x128xf32>
    %50 = tpu.matmul %49, %5, %cst_25 {dimension_numbers = #tpu.dot_dimension_numbers<[1], [1], [0], [0], [0, 0, 1, 0], [], []>} : vector<8x32xbf16>, vector<128x32xbf16>, vector<8x128xf32> -> vector<8x128xf32>
    %51 = vector.extract_strided_slice %10 {offsets = [0, 3], sizes = [8, 1], strides = [1, 1]} : vector<8x8xf32> to vector<8x1xf32>
    %52 = vector.broadcast %51 : vector<8x1xf32> to vector<8x128xf32>
    %53 = arith.addf %50, %52 : vector<8x128xf32>
    %54 = vector.extract_strided_slice %13 {offsets = [3, 0], sizes = [1, 128], strides = [1, 1]} : vector<8x128xf32> to vector<1x128xf32>
    %55 = vector.broadcast %54 : vector<1x128xf32> to vector<8x128xf32>
    %56 = arith.addf %53, %55 : vector<8x128xf32>
    %c0_26 = arith.constant 0 : index
    %c3 = arith.constant 3 : index
    %c0_27 = arith.constant 0 : index
    %c0_28 = arith.constant 0 : index
    %57 = vector.load %arg6[%c0_26, %c3, %c0_27, %c0_28] : memref<1x8x8x128xf32, #tpu.memory_space<vmem>>, vector<1x1x8x128xf32>
    %58 = vector.shape_cast %57 : vector<1x1x8x128xf32> to vector<8x128xf32>
    %59 = vector.shape_cast %56 : vector<8x128xf32> to vector<1x1x8x128xf32>
    tpu.vector_store %arg6[%c0_26, %c3, %c0_27, %c0_28], %59 {strides = array<i32>} : memref<1x8x8x128xf32, #tpu.memory_space<vmem>>, vector<1x1x8x128xf32>,
    %60 = vector.extract_strided_slice %15 {offsets = [0, 128], sizes = [8, 32], strides = [1, 1]} : vector<8x256xbf16> to vector<8x32xbf16>
    %cst_29 = arith.constant dense<0.000000e+00> : vector<8x128xf32>
    %61 = tpu.matmul %60, %5, %cst_29 {dimension_numbers = #tpu.dot_dimension_numbers<[1], [1], [0], [0], [0, 0, 1, 0], [], []>} : vector<8x32xbf16>, vector<128x32xbf16>, vector<8x128xf32> -> vector<8x128xf32>
    %62 = vector.extract_strided_slice %10 {offsets = [0, 4], sizes = [8, 1], strides = [1, 1]} : vector<8x8xf32> to vector<8x1xf32>
    %63 = vector.broadcast %62 : vector<8x1xf32> to vector<8x128xf32>
    %64 = arith.addf %61, %63 : vector<8x128xf32>
    %65 = vector.extract_strided_slice %13 {offsets = [4, 0], sizes = [1, 128], strides = [1, 1]} : vector<8x128xf32> to vector<1x128xf32>
    %66 = vector.broadcast %65 : vector<1x128xf32> to vector<8x128xf32>
    %67 = arith.addf %64, %66 : vector<8x128xf32>
    %c0_30 = arith.constant 0 : index
    %c4 = arith.constant 4 : index
    %c0_31 = arith.constant 0 : index
    %c0_32 = arith.constant 0 : index
    %68 = vector.load %arg6[%c0_30, %c4, %c0_31, %c0_32] : memref<1x8x8x128xf32, #tpu.memory_space<vmem>>, vector<1x1x8x128xf32>
    %69 = vector.shape_cast %68 : vector<1x1x8x128xf32> to vector<8x128xf32>
    %70 = vector.shape_cast %67 : vector<8x128xf32> to vector<1x1x8x128xf32>
    tpu.vector_store %arg6[%c0_30, %c4, %c0_31, %c0_32], %70 {strides = array<i32>} : memref<1x8x8x128xf32, #tpu.memory_space<vmem>>, vector<1x1x8x128xf32>,
    %71 = vector.extract_strided_slice %15 {offsets = [0, 160], sizes = [8, 32], strides = [1, 1]} : vector<8x256xbf16> to vector<8x32xbf16>
    %cst_33 = arith.constant dense<0.000000e+00> : vector<8x128xf32>
    %72 = tpu.matmul %71, %5, %cst_33 {dimension_numbers = #tpu.dot_dimension_numbers<[1], [1], [0], [0], [0, 0, 1, 0], [], []>} : vector<8x32xbf16>, vector<128x32xbf16>, vector<8x128xf32> -> vector<8x128xf32>
    %73 = vector.extract_strided_slice %10 {offsets = [0, 5], sizes = [8, 1], strides = [1, 1]} : vector<8x8xf32> to vector<8x1xf32>
    %74 = vector.broadcast %73 : vector<8x1xf32> to vector<8x128xf32>
    %75 = arith.addf %72, %74 : vector<8x128xf32>
    %76 = vector.extract_strided_slice %13 {offsets = [5, 0], sizes = [1, 128], strides = [1, 1]} : vector<8x128xf32> to vector<1x128xf32>
    %77 = vector.broadcast %76 : vector<1x128xf32> to vector<8x128xf32>
    %78 = arith.addf %75, %77 : vector<8x128xf32>
    %c0_34 = arith.constant 0 : index
    %c5 = arith.constant 5 : index
    %c0_35 = arith.constant 0 : index
    %c0_36 = arith.constant 0 : index
    %79 = vector.load %arg6[%c0_34, %c5, %c0_35, %c0_36] : memref<1x8x8x128xf32, #tpu.memory_space<vmem>>, vector<1x1x8x128xf32>
    %80 = vector.shape_cast %79 : vector<1x1x8x128xf32> to vector<8x128xf32>
    %81 = vector.shape_cast %78 : vector<8x128xf32> to vector<1x1x8x128xf32>
    tpu.vector_store %arg6[%c0_34, %c5, %c0_35, %c0_36], %81 {strides = array<i32>} : memref<1x8x8x128xf32, #tpu.memory_space<vmem>>, vector<1x1x8x128xf32>,
    %82 = vector.extract_strided_slice %15 {offsets = [0, 192], sizes = [8, 32], strides = [1, 1]} : vector<8x256xbf16> to vector<8x32xbf16>
    %cst_37 = arith.constant dense<0.000000e+00> : vector<8x128xf32>
    %83 = tpu.matmul %82, %5, %cst_37 {dimension_numbers = #tpu.dot_dimension_numbers<[1], [1], [0], [0], [0, 0, 1, 0], [], []>} : vector<8x32xbf16>, vector<128x32xbf16>, vector<8x128xf32> -> vector<8x128xf32>
    %84 = vector.extract_strided_slice %10 {offsets = [0, 6], sizes = [8, 1], strides = [1, 1]} : vector<8x8xf32> to vector<8x1xf32>
    %85 = vector.broadcast %84 : vector<8x1xf32> to vector<8x128xf32>
    %86 = arith.addf %83, %85 : vector<8x128xf32>
    %87 = vector.extract_strided_slice %13 {offsets = [6, 0], sizes = [1, 128], strides = [1, 1]} : vector<8x128xf32> to vector<1x128xf32>
    %88 = vector.broadcast %87 : vector<1x128xf32> to vector<8x128xf32>
    %89 = arith.addf %86, %88 : vector<8x128xf32>
    %c0_38 = arith.constant 0 : index
    %c6 = arith.constant 6 : index
    %c0_39 = arith.constant 0 : index
    %c0_40 = arith.constant 0 : index
    %90 = vector.load %arg6[%c0_38, %c6, %c0_39, %c0_40] : memref<1x8x8x128xf32, #tpu.memory_space<vmem>>, vector<1x1x8x128xf32>
    %91 = vector.shape_cast %90 : vector<1x1x8x128xf32> to vector<8x128xf32>
    %92 = vector.shape_cast %89 : vector<8x128xf32> to vector<1x1x8x128xf32>
    tpu.vector_store %arg6[%c0_38, %c6, %c0_39, %c0_40], %92 {strides = array<i32>} : memref<1x8x8x128xf32, #tpu.memory_space<vmem>>, vector<1x1x8x128xf32>,
    %93 = vector.extract_strided_slice %15 {offsets = [0, 224], sizes = [8, 32], strides = [1, 1]} : vector<8x256xbf16> to vector<8x32xbf16>
    %cst_41 = arith.constant dense<0.000000e+00> : vector<8x128xf32>
    %94 = tpu.matmul %93, %5, %cst_41 {dimension_numbers = #tpu.dot_dimension_numbers<[1], [1], [0], [0], [0, 0, 1, 0], [], []>} : vector<8x32xbf16>, vector<128x32xbf16>, vector<8x128xf32> -> vector<8x128xf32>
    %95 = vector.extract_strided_slice %10 {offsets = [0, 7], sizes = [8, 1], strides = [1, 1]} : vector<8x8xf32> to vector<8x1xf32>
    %96 = vector.broadcast %95 : vector<8x1xf32> to vector<8x128xf32>
    %97 = arith.addf %94, %96 : vector<8x128xf32>
    %98 = vector.extract_strided_slice %13 {offsets = [7, 0], sizes = [1, 128], strides = [1, 1]} : vector<8x128xf32> to vector<1x128xf32>
    %99 = vector.broadcast %98 : vector<1x128xf32> to vector<8x128xf32>
    %100 = arith.addf %97, %99 : vector<8x128xf32>
    %c0_42 = arith.constant 0 : index
    %c7 = arith.constant 7 : index
    %c0_43 = arith.constant 0 : index
    %c0_44 = arith.constant 0 : index
    %101 = vector.load %arg6[%c0_42, %c7, %c0_43, %c0_44] : memref<1x8x8x128xf32, #tpu.memory_space<vmem>>, vector<1x1x8x128xf32>
    %102 = vector.shape_cast %101 : vector<1x1x8x128xf32> to vector<8x128xf32>
    %103 = vector.shape_cast %100 : vector<8x128xf32> to vector<1x1x8x128xf32>
    tpu.vector_store %arg6[%c0_42, %c7, %c0_43, %c0_44], %103 {strides = array<i32>} : memref<1x8x8x128xf32, #tpu.memory_space<vmem>>, vector<1x1x8x128xf32>,
    return
  }
  func.func @transform_0(%arg0: i32) -> (i32, i32, i32) {
    %c0_i32 = arith.constant 0 : i32
    %c0_i32_0 = arith.constant 0 : i32
    %c0_i32_1 = arith.constant 0 : i32
    return %arg0, %c0_i32, %c0_i32_0 : i32, i32, i32
  }
  func.func @transform_1(%arg0: i32) -> (i32, i32, i32) {
    %c0_i32 = arith.constant 0 : i32
    %c0_i32_0 = arith.constant 0 : i32
    %c0_i32_1 = arith.constant 0 : i32
    return %arg0, %c0_i32, %c0_i32_0 : i32, i32, i32
  }
  func.func @transform_2(%arg0: i32) -> (i32, i32) {
    %c0_i32 = arith.constant 0 : i32
    %c0_i32_0 = arith.constant 0 : i32
    %c0_i32_1 = arith.constant 0 : i32
    return %c0_i32, %c0_i32_0 : i32, i32
  }
  func.func @transform_3(%arg0: i32) -> (i32, i32) {
    %c0_i32 = arith.constant 0 : i32
    %c0_i32_0 = arith.constant 0 : i32
    %c0_i32_1 = arith.constant 0 : i32
    return %c0_i32, %c0_i32_0 : i32, i32
  }
  func.func @transform_4(%arg0: i32) -> (i32, i32) {
    %c0_i32 = arith.constant 0 : i32
    %c0_i32_0 = arith.constant 0 : i32
    %c0_i32_1 = arith.constant 0 : i32
    return %c0_i32, %c0_i32_0 : i32, i32
  }
  func.func @transform_5(%arg0: i32) -> (i32, i32, i32, i32) {
    %c0_i32 = arith.constant 0 : i32
    %c0_i32_0 = arith.constant 0 : i32
    %c0_i32_1 = arith.constant 0 : i32
    %c0_i32_2 = arith.constant 0 : i32
    return %arg0, %c0_i32, %c0_i32_0, %c0_i32_1 : i32, i32, i32, i32
  }
}

</mosaic_0001>

<llo_original>
// kernel: tpu_custom_call.1
$region0: #{tpu_custom_call.1}
  #allocation0 [shape = 'u32[]', space=smem, size = 0x4, offset = 0x4, fixed_abs, tag = 'smem constant byte address 0x4 - core index']
  #allocation1 [shape = 'u32[144,128]{1,0:T(1,128)}', space=vmem, size = 0x12000, scoped, tag = 'internal scratch']
  %s0 = inlined_call_operand.vmem [shape: f32[2,8,32], index: 0, kind: input, shape index: {}]
  %s1 = inlined_call_operand.vmem [shape: f32[2,128,32], index: 1, kind: input, shape index: {}]
  %s2 = inlined_call_operand.vmem [shape: bf16[32,264], index: 2, kind: input, shape index: {}]
  %s3 = inlined_call_operand.vmem [shape: bf16[8,32], index: 3, kind: input, shape index: {}]
  %s4 = inlined_call_operand.vmem [shape: f32[8,1], index: 4, kind: input, shape index: {}]
  %s5 = inlined_call_operand.hbm [shape: f32[2,8,8,128], index: 5, kind: output, shape index: {}]
  %s6 = sld [smem:[#allocation0]]
  $region53: #{tpu_custom_call.1} parent=0
    _
  %s8 = ssub.s32 1, %s6
  %s9 = scalar_select 0, %s8, %s6
  $region1: #{tpu_custom_call.1} parent=0
    #allocation2 [shape = 'u8[65536]{0}', space=vmem, size = 0x10000, scoped, tag = 'output window, operand 0']
    #allocation3 [shape = 's32[2]{0}', space=sflag, size = 0x8, scoped, tag = 'scoped memory for tpu_custom_call.1']
    %10 = vsyncpa [#allocation3], 0
    %s11 = scalar_lea.sflag [#allocation3], 1
    %12 = vsyncpa %s11, 0
    loop: start=0, step=1, limit=4
    $region2: #{tpu_custom_call.1} parent=1 // loop_pre_header
      _
    $region3: #{tpu_custom_call.1} parent=1 // loop_header
      %s14 = sphi 0, %s18
      %p15 = scmp.ge.s32.totalorder %s14, 4
      %s24 = sphi 0, %s26
      %s27 = sphi 0, %s24
      %s28 = sphi 0, %s27
      %s44 = sphi 0, %s28
      %s50 = sphi 0, %s52
      %s53 = sphi 0, %s50
      %s54 = sphi 0, %s53
      %s70 = sphi 0, %s54
      %s74 = sphi 0, %s74
      %s76 = sphi 0, %s74
      %s77 = sphi 0, %s76
      %s91 = sphi 0, %s77
      %s95 = sphi 0, %s95
      %s97 = sphi 0, %s95
      %s98 = sphi 0, %s97
      %s112 = sphi 0, %s98
      %s116 = sphi 0, %s116
      %s118 = sphi 0, %s116
      %s119 = sphi 0, %s118
      %s133 = sphi 0, %s119
      %s139 = sphi 0, %s141
      %s142 = sphi 0, %s139
      %s143 = sphi 0, %s142
      %s159 = sphi 0, %s143
    $region4: #{tpu_custom_call.1} parent=1 // loop_header_branch
      %17 = sbr.rel (%p15) target = $region8
    $region5: #{tpu_custom_call.1} parent=1 // loop_body
      %s19 = ssub.s32 %s14, 1
      %s20 = ssub.s32 %s14, 2
      %s21 = sadd.s32 %s14, 1
      %s22 = ssub.s32 %s14, %s21
      %p23 = scmp.eq.s32.totalorder %s22, 0
      %s25 = sadd.s32 %s24, 1
      %s26 = scalar_select %p23, %s24, %s25
      %p29 = pneg %p23
      %p30 = scmp.eq.s32.totalorder %s14, 1
      %p31 = por %p29, %p30
      %p32 = scmp.ne.s32.totalorder %s24, %s27
      %p33 = scmp.eq.s32.totalorder %s14, 0
      %p34 = por %p32, %p33
      %p35 = scmp.ne.s32.totalorder %s24, %s27
      %p36 = scmp.eq.s32.totalorder %s19, 1
      %p37 = por %p35, %p36
      %p38 = scmp.ne.s32.totalorder %s27, %s28
      %p39 = scmp.eq.s32.totalorder %s19, 0
      %p40 = por %p38, %p39
      %p41 = scmp.ne.s32.totalorder %s27, %s28
      %p42 = scmp.eq.s32.totalorder %s20, 1
      %p43 = por %p41, %p42
      %p45 = scmp.ne.s32.totalorder %s28, %s44
      %p46 = scmp.eq.s32.totalorder %s20, 0
      %p47 = por %p45, %p46
      %s48 = ssub.s32 %s14, %s21
      %p49 = scmp.eq.s32.totalorder %s48, 0
      %s51 = sadd.s32 %s50, 1
      %s52 = scalar_select %p49, %s50, %s51
      %p55 = pneg %p49
      %p56 = scmp.eq.s32.totalorder %s14, 1
      %p57 = por %p55, %p56
      %p58 = scmp.ne.s32.totalorder %s50, %s53
      %p59 = scmp.eq.s32.totalorder %s14, 0
      %p60 = por %p58, %p59
      %p61 = scmp.ne.s32.totalorder %s50, %s53
      %p62 = scmp.eq.s32.totalorder %s19, 1
      %p63 = por %p61, %p62
      %p64 = scmp.ne.s32.totalorder %s53, %s54
      %p65 = scmp.eq.s32.totalorder %s19, 0
      %p66 = por %p64, %p65
      %p67 = scmp.ne.s32.totalorder %s53, %s54
      %p68 = scmp.eq.s32.totalorder %s20, 1
      %p69 = por %p67, %p68
      %p71 = scmp.ne.s32.totalorder %s54, %s70
      %p72 = scmp.eq.s32.totalorder %s20, 0
      %p73 = por %p71, %p72
      %s75 = sadd.s32 %s74, 1
      %p78 = scmp.eq.s32.totalorder %s14, 1
      %p79 = scmp.ne.s32.totalorder %s74, %s76
      %p80 = scmp.eq.s32.totalorder %s14, 0
      %p81 = por %p79, %p80
      %p82 = scmp.ne.s32.totalorder %s74, %s76
      %p83 = scmp.eq.s32.totalorder %s19, 1
      %p84 = por %p82, %p83
      %p85 = scmp.ne.s32.totalorder %s76, %s77
      %p86 = scmp.eq.s32.totalorder %s19, 0
      %p87 = por %p85, %p86
      %p88 = scmp.ne.s32.totalorder %s76, %s77
      %p89 = scmp.eq.s32.totalorder %s20, 1
      %p90 = por %p88, %p89
      %p92 = scmp.ne.s32.totalorder %s77, %s91
      %p93 = scmp.eq.s32.totalorder %s20, 0
      %p94 = por %p92, %p93
      %s96 = sadd.s32 %s95, 1
      %p99 = scmp.eq.s32.totalorder %s14, 1
      %p100 = scmp.ne.s32.totalorder %s95, %s97
      %p101 = scmp.eq.s32.totalorder %s14, 0
      %p102 = por %p100, %p101
      %p103 = scmp.ne.s32.totalorder %s95, %s97
      %p104 = scmp.eq.s32.totalorder %s19, 1
      %p105 = por %p103, %p104
      %p106 = scmp.ne.s32.totalorder %s97, %s98
      %p107 = scmp.eq.s32.totalorder %s19, 0
      %p108 = por %p106, %p107
      %p109 = scmp.ne.s32.totalorder %s97, %s98
      %p110 = scmp.eq.s32.totalorder %s20, 1
      %p111 = por %p109, %p110
      %p113 = scmp.ne.s32.totalorder %s98, %s112
      %p114 = scmp.eq.s32.totalorder %s20, 0
      %p115 = por %p113, %p114
      %s117 = sadd.s32 %s116, 1
      %p120 = scmp.eq.s32.totalorder %s14, 1
      %p121 = scmp.ne.s32.totalorder %s116, %s118
      %p122 = scmp.eq.s32.totalorder %s14, 0
      %p123 = por %p121, %p122
      %p124 = scmp.ne.s32.totalorder %s116, %s118
      %p125 = scmp.eq.s32.totalorder %s19, 1
      %p126 = por %p124, %p125
      %p127 = scmp.ne.s32.totalorder %s118, %s119
      %p128 = scmp.eq.s32.totalorder %s19, 0
      %p129 = por %p127, %p128
      %p130 = scmp.ne.s32.totalorder %s118, %s119
      %p131 = scmp.eq.s32.totalorder %s20, 1
      %p132 = por %p130, %p131
      %p134 = scmp.ne.s32.totalorder %s119, %s133
      %p135 = scmp.eq.s32.totalorder %s20, 0
      %p136 = por %p134, %p135
      %s137 = ssub.s32 %s14, %s21
      %p138 = scmp.eq.s32.totalorder %s137, 0
      %s140 = sadd.s32 %s139, 1
      %s141 = scalar_select %p138, %s139, %s140
      %p144 = pneg %p138
      %p145 = scmp.eq.s32.totalorder %s14, 1
      %p146 = por %p144, %p145
      %p147 = scmp.ne.s32.totalorder %s139, %s142
      %p148 = scmp.eq.s32.totalorder %s14, 0
      %p149 = por %p147, %p148
      %p150 = scmp.ne.s32.totalorder %s139, %s142
      %p151 = scmp.eq.s32.totalorder %s19, 1
      %p152 = por %p150, %p151
      %p153 = scmp.ne.s32.totalorder %s142, %s143
      %p154 = scmp.eq.s32.totalorder %s19, 0
      %p155 = por %p153, %p154
      %p156 = scmp.ne.s32.totalorder %s142, %s143
      %p157 = scmp.eq.s32.totalorder %s20, 1
      %p158 = por %p156, %p157
      %p160 = scmp.ne.s32.totalorder %s143, %s159
      %p161 = scmp.eq.s32.totalorder %s20, 0
      %p162 = por %p160, %p161
      %p163 = scmp.le.s32.totalorder 1, %s14
      %p164 = scmp.lt.s32.totalorder %s14, 3
      %p165 = pnand %p163, %p164
      %p166 = pneg %p165
      // Predicated region
      $region9: #{tpu_custom_call.1} parent=5 // pred_check
        _
      $region10: #{tpu_custom_call.1} parent=5 // pred_check_branch
        %168 = sbr.rel (%p165) target = $region12
      $region11: #{tpu_custom_call.1} parent=5 // pred_region
        %s169 = ssub.s32 %s14, 1
        // Predicated region
        $region13: #{tpu_custom_call.1} parent=11 // pred_check
          %p170 = pneg %p87
        $region14: #{tpu_custom_call.1} parent=11 // pred_check_branch
          %172 = sbr.rel (%p170) target = $region16
        $region15: #{tpu_custom_call.1} parent=11 // pred_region
          _
        $region16: #{tpu_custom_call.1} parent=11 // pred_fallthru
          _
        // Predicated region
        $region17: #{tpu_custom_call.1} parent=11 // pred_check
          %p173 = pneg %p108
        $region18: #{tpu_custom_call.1} parent=11 // pred_check_branch
          %175 = sbr.rel (%p173) target = $region20
        $region19: #{tpu_custom_call.1} parent=11 // pred_region
          _
        $region20: #{tpu_custom_call.1} parent=11 // pred_fallthru
          _
        // Predicated region
        $region21: #{tpu_custom_call.1} parent=11 // pred_check
          %p176 = pneg %p129
        $region22: #{tpu_custom_call.1} parent=11 // pred_check_branch
          %178 = sbr.rel (%p176) target = $region24
        $region23: #{tpu_custom_call.1} parent=11 // pred_region
          _
        $region24: #{tpu_custom_call.1} parent=11 // pred_fallthru
          _
      $region12: #{tpu_custom_call.1} parent=5 // pred_fallthru
        _
      %p179 = scmp.lt.s32.totalorder %s14, 2
      // Predicated region
      $region25: #{tpu_custom_call.1} parent=5 // pred_check
        %p180 = pneg %p179
      $region26: #{tpu_custom_call.1} parent=5 // pred_check_branch
        %182 = sbr.rel (%p180) target = $region28
      $region27: #{tpu_custom_call.1} parent=5 // pred_region
        // Predicated region
        $region29: #{tpu_custom_call.1} parent=27 // pred_check
          %p183 = pneg %p34
        $region30: #{tpu_custom_call.1} parent=27 // pred_check_branch
          %185 = sbr.rel (%p183) target = $region32
        $region31: #{tpu_custom_call.1} parent=27 // pred_region
          %p186 = scmp.lt.s32.totalorder %s14, 1
          %s187 = scalar_select %p186, %s14, 1
          %s188 = smul.addr %s187, 8
          %s189 = scalar_lea.vmem %s0, %s188
        $region32: #{tpu_custom_call.1} parent=27 // pred_fallthru
          _
        // Predicated region
        $region33: #{tpu_custom_call.1} parent=27 // pred_check
          %p190 = pneg %p60
        $region34: #{tpu_custom_call.1} parent=27 // pred_check_branch
          %192 = sbr.rel (%p190) target = $region36
        $region35: #{tpu_custom_call.1} parent=27 // pred_region
          %p193 = scmp.lt.s32.totalorder %s14, 1
          %s194 = scalar_select %p193, %s14, 1
          %s195 = smul.addr %s194, 16
          %s196 = smul.addr %s195, 8
          %s197 = scalar_lea.vmem %s1, %s196
        $region36: #{tpu_custom_call.1} parent=27 // pred_fallthru
          _
      $region28: #{tpu_custom_call.1} parent=5 // pred_fallthru
        _
      %p198 = scmp.le.s32.totalorder 1, %s14
      %p199 = scmp.lt.s32.totalorder %s14, 3
      %p200 = pnand %p198, %p199
      %p201 = pneg %p200
      // Predicated region
      $region37: #{tpu_custom_call.1} parent=5 // pred_check
        _
      $region38: #{tpu_custom_call.1} parent=5 // pred_check_branch
        %203 = sbr.rel (%p200) target = $region40
      $region39: #{tpu_custom_call.1} parent=5 // pred_region
        %s204 = ssub.s32 %s14, 1
        %p205 = scmp.lt.s32.totalorder %s19, 1
        %s206 = scalar_select %p205, %s19, 1
        %s207 = smul.addr %s206, 8
        %s208 = scalar_lea.vmem %s0, %s207
        %p209 = pneg %p40
        %p210 = pneg %p37
        %p211 = scmp.lt.s32.totalorder %s19, 1
        %s212 = scalar_select %p211, %s19, 1
        %s213 = smul.addr %s212, 16
        %s214 = smul.addr %s213, 8
        %s215 = scalar_lea.vmem %s1, %s214
        %p216 = pneg %p66
        %p217 = pneg %p63
        %p218 = pneg %p87
        %p219 = pneg %p84
        %p220 = pneg %p108
        %p221 = pneg %p105
        %p222 = pneg %p129
        %p223 = pneg %p126
        %p224 = pneg %p155
        %p225 = pneg %p152
        %s226 = sand.u32 %s142, 1
        %s227 = scalar_lea.sflag [#allocation3], %s226
        %s228 = sand.u32 %s142, 1
        %s229 = smul.addr %s228, 64
        %s230 = scalar_lea.vmem [#allocation2], %s229
        %p231 = scmp.lt.s32.totalorder %s19, 1
        %s232 = scalar_select %p231, %s19, 1
        %s233 = smul.addr %s232, 8
        %s234 = scalar_lea.vmem %s0, %s233
        %p235 = scmp.lt.s32.totalorder %s19, 1
        %s236 = scalar_select %p235, %s19, 1
        %s237 = smul.addr %s236, 16
        %s238 = smul.addr %s237, 8
        %s239 = scalar_lea.vmem %s1, %s238
        %v241 = vld [vmem:[%s234] sm:$0xff]
        %v242 = vpack.c.bf16 %v241, %v241
        %v243 = vld [vmem:[%s239] sm:$0xff]
        %v244 = vld [vmem:[%s239 + $0x8] sm:$0xff]
        %v245 = vld [vmem:[%s239 + $0x10] sm:$0xff]
        %v246 = vld [vmem:[%s239 + $0x18] sm:$0xff]
        %v247 = vld [vmem:[%s239 + $0x20] sm:$0xff]
        %v248 = vld [vmem:[%s239 + $0x28] sm:$0xff]
        %v249 = vld [vmem:[%s239 + $0x30] sm:$0xff]
        %v250 = vld [vmem:[%s239 + $0x38] sm:$0xff]
        %v251 = vld [vmem:[%s239 + $0x40] sm:$0xff]
        %v252 = vld [vmem:[%s239 + $0x48] sm:$0xff]
        %v253 = vld [vmem:[%s239 + $0x50] sm:$0xff]
        %v254 = vld [vmem:[%s239 + $0x58] sm:$0xff]
        %v255 = vld [vmem:[%s239 + $0x60] sm:$0xff]
        %v256 = vld [vmem:[%s239 + $0x68] sm:$0xff]
        %v257 = vld [vmem:[%s239 + $0x70] sm:$0xff]
        %v258 = vld [vmem:[%s239 + $0x78] sm:$0xff]
        %v259 = vpack.c.bf16 %v244, %v243
        %v260 = vpack.c.bf16 %v246, %v245
        %v261 = vpack.c.bf16 %v248, %v247
        %v262 = vpack.c.bf16 %v250, %v249
        %v263 = vpack.c.bf16 %v252, %v251
        %v264 = vpack.c.bf16 %v254, %v253
        %v265 = vpack.c.bf16 %v256, %v255
        %v266 = vpack.c.bf16 %v258, %v257
        %v267 = vld [vmem:[%s2] sm:$0xff]
        %v268 = vld [vmem:[%s2 + $0x8] sm:$0xf]
        %v269 = vld [vmem:[%s2 + $0xc] sm:$0xff]
        %v270 = vld [vmem:[%s2 + $0x14] sm:$0xf]
        %v271 = vld [vmem:[%s2 + $0x18] sm:$0xff]
        %v272 = vld [vmem:[%s2 + $0x20] sm:$0xf]
        %v273 = vld [vmem:[%s2 + $0x24] sm:$0xff]
        %v274 = vld [vmem:[%s2 + $0x2c] sm:$0xf]
        %v275 = vld [vmem:[%s3] sm:$0xf]
        %v276 = vld [vmem:[%s4] sm:$0xff]
        %v285 = vunpack.c.l.b16 %v267
        %v286 = vunpack.c.h.b16 %v267
        %v287 = vunpack.c.l.b16 %v268
        %v288 = vunpack.c.l.b16 %v269
        %v289 = vunpack.c.h.b16 %v269
        %v290 = vunpack.c.l.b16 %v270
        %v291 = vunpack.c.l.b16 %v271
        %v292 = vunpack.c.h.b16 %v271
        %v293 = vunpack.c.l.b16 %v272
        %v294 = vunpack.c.l.b16 %v273
        %v295 = vunpack.c.h.b16 %v273
        %v296 = vunpack.c.l.b16 %v274
        %v297 = vpack.c.b16 %v288, %v285
        %v298 = vpack.c.b16 %v289, %v286
        %v299 = vpack.c.b16 %v290, %v287
        %v300 = vpack.c.b16 %v294, %v291
        %v301 = vpack.c.b16 %v295, %v292
        %v302 = vpack.c.b16 %v296, %v293
        %vm309 = vcmask 261120
        %v311 = vsel %vm309, %v242, 0
        %313 = vmatprep.subr.bf16.mxu0 %v298
        %314 = vmatpush1.bf16.msra.mxu0 %v297
        %315 = vmatprep.subr.bf16.mxu0 %v301
        %316 = vmatpush1.bf16.msra.mxu0 %v300
        %317 = vmatprep.subr.bf16.mxu0 0
        %318 = vmatpush1.bf16.msra.mxu0 0
        %319 = vmatprep.subr.bf16.mxu0 0
        %320 = vmatpush1.bf16.msra.mxu0 0
        %321 = vmatprep.subr.bf16.mxu0 0
        %322 = vmatpush1.bf16.msra.mxu0 0
        %323 = vmatprep.subr.bf16.mxu0 0
        %324 = vmatpush1.bf16.msra.mxu0 0
        %325 = vmatprep.subr.bf16.mxu0 0
        %326 = vmatpush1.bf16.msra.mxu0 0
        %327 = vmatprep.subr.bf16.mxu0 0
        %328 = vmatpush1.bf16.msra.mxu0 0
        %329 = vmatprep.subr.bf16.mxu0 0
        %330 = vmatpush1.bf16.msra.mxu0 0
        %331 = vmatprep.subr.bf16.mxu0 0
        %332 = vmatpush1.bf16.msra.mxu0 0
        %333 = vmatprep.subr.bf16.mxu0 0
        %334 = vmatpush1.bf16.msra.mxu0 0
        %335 = vmatprep.subr.bf16.mxu0 0
        %336 = vmatpush1.bf16.msra.mxu0 0
        %337 = vmatprep.subr.bf16.mxu0 0
        %338 = vmatpush1.bf16.msra.mxu0 0
        %339 = vmatprep.subr.bf16.mxu0 0
        %340 = vmatpush1.bf16.msra.mxu0 0
        %341 = vmatprep.subr.bf16.mxu0 0
        %342 = vmatpush1.bf16.msra.mxu0 0
        %343 = vmatprep.subr.bf16.mxu0 0
        %344 = vmatpush1.bf16.msra.mxu0 0
        %345 = vmatprep.mubr.bf16.mxu0 0
        %346 = vmatmul.mubr.bf16.gmra.mrb[0].mxu0 %v311
        %v347 = vpop.f32.mrb[0].mxu0
        %v348 = vadd.f32 0.0, %v347
        %v349 = vpop.f32.mrb[0].mxu0
        %v350 = vadd.f32 0.0, %v349
        %v351 = vpop.f32.mrb[0].mxu0
        %v352 = vpop.f32.mrb[0].mxu0
        %353 = vdwg.mxu0
        %354 = vmatprep.subr.bf16.mxu0 0
        %355 = vmatpush1.bf16.msra.mxu0 %v299
        %356 = vmatprep.subr.bf16.mxu0 0
        %357 = vmatpush1.bf16.msra.mxu0 %v302
        %358 = vmatprep.subr.bf16.mxu0 0
        %359 = vmatpush1.bf16.msra.mxu0 0
        %360 = vmatprep.subr.bf16.mxu0 0
        %361 = vmatpush1.bf16.msra.mxu0 0
        %362 = vmatprep.subr.bf16.mxu0 0
        %363 = vmatpush1.bf16.msra.mxu0 0
        %364 = vmatprep.subr.bf16.mxu0 0
        %365 = vmatpush1.bf16.msra.mxu0 0
        %366 = vmatprep.subr.bf16.mxu0 0
        %367 = vmatpush1.bf16.msra.mxu0 0
        %368 = vmatprep.subr.bf16.mxu0 0
        %369 = vmatpush1.bf16.msra.mxu0 0
        %370 = vmatprep.subr.bf16.mxu0 0
        %371 = vmatpush1.bf16.msra.mxu0 0
        %372 = vmatprep.subr.bf16.mxu0 0
        %373 = vmatpush1.bf16.msra.mxu0 0
        %374 = vmatprep.subr.bf16.mxu0 0
        %375 = vmatpush1.bf16.msra.mxu0 0
        %376 = vmatprep.subr.bf16.mxu0 0
        %377 = vmatpush1.bf16.msra.mxu0 0
        %378 = vmatprep.subr.bf16.mxu0 0
        %379 = vmatpush1.bf16.msra.mxu0 0
        %380 = vmatprep.subr.bf16.mxu0 0
        %381 = vmatpush1.bf16.msra.mxu0 0
        %382 = vmatprep.subr.bf16.mxu0 0
        %383 = vmatpush1.bf16.msra.mxu0 0
        %384 = vmatprep.subr.bf16.mxu0 0
        %385 = vmatpush1.bf16.msra.mxu0 0
        %386 = vmatprep.mubr.bf16.mxu0 0
        %387 = vmatmul.mubr.bf16.gmra.mrb[0].mxu0 %v311
        %v388 = vpop.f32.mrb[0].mxu0
        %v389 = vadd.f32 0.0, %v388
        %v390 = vpop.f32.mrb[0].mxu0
        %v391 = vpop.f32.mrb[0].mxu0
        %v392 = vpop.f32.mrb[0].mxu0
        %393 = vdwg.mxu0
        %395 = vset.pattern.permute.xlu0 0
        %396 = vperm.xlu0 %395, %v276
        %v397 = vpop.permute.xlu0 %396
        %v400 = vsel %vm309, %v275, 0
        %v403 = vsel %vm309, %v259, 0
        %v406 = vsel %vm309, %v260, 0
        %v409 = vsel %vm309, %v261, 0
        %v412 = vsel %vm309, %v262, 0
        %v415 = vsel %vm309, %v263, 0
        %v418 = vsel %vm309, %v264, 0
        %v421 = vsel %vm309, %v265, 0
        %v424 = vsel %vm309, %v266, 0
        %426 = vmatprep.subr.bf16.mxu0 0
        %427 = vmatpush1.bf16.xpose.msra.mxu0 %v403
        %428 = vmatprep.subr.bf16.mxu0 0
        %429 = vmatpush1.bf16.xpose.msra.mxu0 %v406
        %430 = vmatprep.subr.bf16.mxu0 0
        %431 = vmatpush1.bf16.xpose.msra.mxu0 %v409
        %432 = vmatprep.subr.bf16.mxu0 0
        %433 = vmatpush1.bf16.xpose.msra.mxu0 %v412
        %434 = vmatprep.subr.bf16.mxu0 0
        %435 = vmatpush1.bf16.xpose.msra.mxu0 %v415
        %436 = vmatprep.subr.bf16.mxu0 0
        %437 = vmatpush1.bf16.xpose.msra.mxu0 %v418
        %438 = vmatprep.subr.bf16.mxu0 0
        %439 = vmatpush1.bf16.xpose.msra.mxu0 %v421
        %440 = vmatprep.subr.bf16.mxu0 0
        %441 = vmatpush1.bf16.xpose.msra.mxu0 %v424
        %442 = vmatprep.subr.bf16.mxu0 0
        %443 = vmatpush1.bf16.xpose.msra.mxu0 0
        %444 = vmatprep.subr.bf16.mxu0 0
        %445 = vmatpush1.bf16.xpose.msra.mxu0 0
        %446 = vmatprep.subr.bf16.mxu0 0
        %447 = vmatpush1.bf16.xpose.msra.mxu0 0
        %448 = vmatprep.subr.bf16.mxu0 0
        %449 = vmatpush1.bf16.xpose.msra.mxu0 0
        %450 = vmatprep.subr.bf16.mxu0 0
        %451 = vmatpush1.bf16.xpose.msra.mxu0 0
        %452 = vmatprep.subr.bf16.mxu0 0
        %453 = vmatpush1.bf16.xpose.msra.mxu0 0
        %454 = vmatprep.subr.bf16.mxu0 0
        %455 = vmatpush1.bf16.xpose.msra.mxu0 0
        %456 = vmatprep.subr.bf16.mxu0 0
        %457 = vmatpush1.bf16.xpose.msra.mxu0 0
        %458 = vmatprep.mubr.bf16.mxu0 0
        %459 = vmatmul.mubr.bf16.gmra.mrb[0].mxu0 %v400
        %v460 = vpop.f32.mrb[0].mxu0
        %v461 = vadd.f32 %v397, %v460
        %v462 = vpop.f32.mrb[0].mxu0
        %v463 = vpop.f32.mrb[0].mxu0
        %v464 = vpop.f32.mrb[0].mxu0
        %465 = vdwg.mxu0
        %v466 = vpack.c.bf16 %v348, %v348
        %v467 = vpack.c.bf16 %v350, %v350
        %469 = vset.pattern.permute.xlu0 0
        %470 = vperm.xlu0 %469, %v389
        %v471 = vpop.permute.xlu0 %470
        %v474 = vsel %vm309, %v466, 0
        %476 = vmatprep.subr.bf16.mxu0 0
        %477 = vmatpush1.bf16.xpose.msra.mxu0 %v403
        %478 = vmatprep.subr.bf16.mxu0 0
        %479 = vmatpush1.bf16.xpose.msra.mxu0 %v406
        %480 = vmatprep.subr.bf16.mxu0 0
        %481 = vmatpush1.bf16.xpose.msra.mxu0 %v409
        %482 = vmatprep.subr.bf16.mxu0 0
        %483 = vmatpush1.bf16.xpose.msra.mxu0 %v412
        %484 = vmatprep.subr.bf16.mxu0 0
        %485 = vmatpush1.bf16.xpose.msra.mxu0 %v415
        %486 = vmatprep.subr.bf16.mxu0 0
        %487 = vmatpush1.bf16.xpose.msra.mxu0 %v418
        %488 = vmatprep.subr.bf16.mxu0 0
        %489 = vmatpush1.bf16.xpose.msra.mxu0 %v421
        %490 = vmatprep.subr.bf16.mxu0 0
        %491 = vmatpush1.bf16.xpose.msra.mxu0 %v424
        %492 = vmatprep.subr.bf16.mxu0 0
        %493 = vmatpush1.bf16.xpose.msra.mxu0 0
        %494 = vmatprep.subr.bf16.mxu0 0
        %495 = vmatpush1.bf16.xpose.msra.mxu0 0
        %496 = vmatprep.subr.bf16.mxu0 0
        %497 = vmatpush1.bf16.xpose.msra.mxu0 0
        %498 = vmatprep.subr.bf16.mxu0 0
        %499 = vmatpush1.bf16.xpose.msra.mxu0 0
        %500 = vmatprep.subr.bf16.mxu0 0
        %501 = vmatpush1.bf16.xpose.msra.mxu0 0
        %502 = vmatprep.subr.bf16.mxu0 0
        %503 = vmatpush1.bf16.xpose.msra.mxu0 0
        %504 = vmatprep.subr.bf16.mxu0 0
        %505 = vmatpush1.bf16.xpose.msra.mxu0 0
        %506 = vmatprep.subr.bf16.mxu0 0
        %507 = vmatpush1.bf16.xpose.msra.mxu0 0
        %508 = vmatprep.mubr.bf16.mxu0 0
        %509 = vmatmul.mubr.bf16.gmra.mrb[0].mxu0 %v474
        %v510 = vpop.f32.mrb[0].mxu0
        %v511 = vadd.f32 %v471, %v510
        %v512 = vpop.f32.mrb[0].mxu0
        %v513 = vpop.f32.mrb[0].mxu0
        %v514 = vpop.f32.mrb[0].mxu0
        %515 = vdwg.mxu0
        %v516 = vlaneseq
        %v517 = vshrl.u32 %v516, 7
        %v518 = vsub.s32 0, %v517
        %v519 = vrot.slane %v461, %v518
        %v520 = vadd.f32 %v511, %v519
        %521 = vst [vmem:[%s230] sm:$0xff] %v520
        %522 = vset.pattern.permute.xlu0 1
        %523 = vperm.xlu0 %522, %v389
        %v524 = vpop.permute.xlu0 %523
        %527 = vrot.lane.b32.xlu0 %v466, 96
        %v528 = vpop.permute.xlu0 %527
        %v530 = vsel %vm309, %v528, 0
        %532 = vmatprep.subr.bf16.mxu0 0
        %533 = vmatpush1.bf16.xpose.msra.mxu0 %v403
        %534 = vmatprep.subr.bf16.mxu0 0
        %535 = vmatpush1.bf16.xpose.msra.mxu0 %v406
        %536 = vmatprep.subr.bf16.mxu0 0
        %537 = vmatpush1.bf16.xpose.msra.mxu0 %v409
        %538 = vmatprep.subr.bf16.mxu0 0
        %539 = vmatpush1.bf16.xpose.msra.mxu0 %v412
        %540 = vmatprep.subr.bf16.mxu0 0
        %541 = vmatpush1.bf16.xpose.msra.mxu0 %v415
        %542 = vmatprep.subr.bf16.mxu0 0
        %543 = vmatpush1.bf16.xpose.msra.mxu0 %v418
        %544 = vmatprep.subr.bf16.mxu0 0
        %545 = vmatpush1.bf16.xpose.msra.mxu0 %v421
        %546 = vmatprep.subr.bf16.mxu0 0
        %547 = vmatpush1.bf16.xpose.msra.mxu0 %v424
        %548 = vmatprep.subr.bf16.mxu0 0
        %549 = vmatpush1.bf16.xpose.msra.mxu0 0
        %550 = vmatprep.subr.bf16.mxu0 0
        %551 = vmatpush1.bf16.xpose.msra.mxu0 0
        %552 = vmatprep.subr.bf16.mxu0 0
        %553 = vmatpush1.bf16.xpose.msra.mxu0 0
        %554 = vmatprep.subr.bf16.mxu0 0
        %555 = vmatpush1.bf16.xpose.msra.mxu0 0
        %556 = vmatprep.subr.bf16.mxu0 0
        %557 = vmatpush1.bf16.xpose.msra.mxu0 0
        %558 = vmatprep.subr.bf16.mxu0 0
        %559 = vmatpush1.bf16.xpose.msra.mxu0 0
        %560 = vmatprep.subr.bf16.mxu0 0
        %561 = vmatpush1.bf16.xpose.msra.mxu0 0
        %562 = vmatprep.subr.bf16.mxu0 0
        %563 = vmatpush1.bf16.xpose.msra.mxu0 0
        %564 = vmatprep.mubr.bf16.mxu0 0
        %565 = vmatmul.mubr.bf16.gmra.mrb[0].mxu0 %v530
        %v566 = vpop.f32.mrb[0].mxu0
        %v567 = vadd.f32 %v524, %v566
        %v568 = vpop.f32.mrb[0].mxu0
        %v569 = vpop.f32.mrb[0].mxu0
        %v570 = vpop.f32.mrb[0].mxu0
        %571 = vdwg.mxu0
        %v572 = vlaneseq
        %v573 = vshrl.u32 %v572, 7
        %v574 = vsub.s32 1, %v573
        %v575 = vrot.slane %v461, %v574
        %v576 = vadd.f32 %v567, %v575
        %s577 = scalar_lea.vmem %s230, 8 [#allocation2]
        %578 = vst [vmem:[%s577] sm:$0xff] %v576
        %579 = vset.pattern.permute.xlu0 2
        %580 = vperm.xlu0 %579, %v389
        %v581 = vpop.permute.xlu0 %580
        %583 = vrot.lane.b32.xlu0 %v466, 64
        %v584 = vpop.permute.xlu0 %583
        %v586 = vsel %vm309, %v584, 0
        %588 = vmatprep.subr.bf16.mxu0 0
        %589 = vmatpush1.bf16.xpose.msra.mxu0 %v403
        %590 = vmatprep.subr.bf16.mxu0 0
        %591 = vmatpush1.bf16.xpose.msra.mxu0 %v406
        %592 = vmatprep.subr.bf16.mxu0 0
        %593 = vmatpush1.bf16.xpose.msra.mxu0 %v409
        %594 = vmatprep.subr.bf16.mxu0 0
        %595 = vmatpush1.bf16.xpose.msra.mxu0 %v412
        %596 = vmatprep.subr.bf16.mxu0 0
        %597 = vmatpush1.bf16.xpose.msra.mxu0 %v415
        %598 = vmatprep.subr.bf16.mxu0 0
        %599 = vmatpush1.bf16.xpose.msra.mxu0 %v418
        %600 = vmatprep.subr.bf16.mxu0 0
        %601 = vmatpush1.bf16.xpose.msra.mxu0 %v421
        %602 = vmatprep.subr.bf16.mxu0 0
        %603 = vmatpush1.bf16.xpose.msra.mxu0 %v424
        %604 = vmatprep.subr.bf16.mxu0 0
        %605 = vmatpush1.bf16.xpose.msra.mxu0 0
        %606 = vmatprep.subr.bf16.mxu0 0
        %607 = vmatpush1.bf16.xpose.msra.mxu0 0
        %608 = vmatprep.subr.bf16.mxu0 0
        %609 = vmatpush1.bf16.xpose.msra.mxu0 0
        %610 = vmatprep.subr.bf16.mxu0 0
        %611 = vmatpush1.bf16.xpose.msra.mxu0 0
        %612 = vmatprep.subr.bf16.mxu0 0
        %613 = vmatpush1.bf16.xpose.msra.mxu0 0
        %614 = vmatprep.subr.bf16.mxu0 0
        %615 = vmatpush1.bf16.xpose.msra.mxu0 0
        %616 = vmatprep.subr.bf16.mxu0 0
        %617 = vmatpush1.bf16.xpose.msra.mxu0 0
        %618 = vmatprep.subr.bf16.mxu0 0
        %619 = vmatpush1.bf16.xpose.msra.mxu0 0
        %620 = vmatprep.mubr.bf16.mxu0 0
        %621 = vmatmul.mubr.bf16.gmra.mrb[0].mxu0 %v586
        %v622 = vpop.f32.mrb[0].mxu0
        %v623 = vadd.f32 %v581, %v622
        %v624 = vpop.f32.mrb[0].mxu0
        %v625 = vpop.f32.mrb[0].mxu0
        %v626 = vpop.f32.mrb[0].mxu0
        %627 = vdwg.mxu0
        %v628 = vlaneseq
        %v629 = vshrl.u32 %v628, 7
        %v630 = vsub.s32 2, %v629
        %v631 = vrot.slane %v461, %v630
        %v632 = vadd.f32 %v623, %v631
        %s633 = scalar_lea.vmem %s230, 16 [#allocation2]
        %634 = vst [vmem:[%s633] sm:$0xff] %v632
        %635 = vset.pattern.permute.xlu0 3
        %636 = vperm.xlu0 %635, %v389
        %v637 = vpop.permute.xlu0 %636
        %639 = vrot.lane.b32.xlu0 %v466, 32
        %v640 = vpop.permute.xlu0 %639
        %v642 = vsel %vm309, %v640, 0
        %644 = vmatprep.subr.bf16.mxu0 0
        %645 = vmatpush1.bf16.xpose.msra.mxu0 %v403
        %646 = vmatprep.subr.bf16.mxu0 0
        %647 = vmatpush1.bf16.xpose.msra.mxu0 %v406
        %648 = vmatprep.subr.bf16.mxu0 0
        %649 = vmatpush1.bf16.xpose.msra.mxu0 %v409
        %650 = vmatprep.subr.bf16.mxu0 0
        %651 = vmatpush1.bf16.xpose.msra.mxu0 %v412
        %652 = vmatprep.subr.bf16.mxu0 0
        %653 = vmatpush1.bf16.xpose.msra.mxu0 %v415
        %654 = vmatprep.subr.bf16.mxu0 0
        %655 = vmatpush1.bf16.xpose.msra.mxu0 %v418
        %656 = vmatprep.subr.bf16.mxu0 0
        %657 = vmatpush1.bf16.xpose.msra.mxu0 %v421
        %658 = vmatprep.subr.bf16.mxu0 0
        %659 = vmatpush1.bf16.xpose.msra.mxu0 %v424
        %660 = vmatprep.subr.bf16.mxu0 0
        %661 = vmatpush1.bf16.xpose.msra.mxu0 0
        %662 = vmatprep.subr.bf16.mxu0 0
        %663 = vmatpush1.bf16.xpose.msra.mxu0 0
        %664 = vmatprep.subr.bf16.mxu0 0
        %665 = vmatpush1.bf16.xpose.msra.mxu0 0
        %666 = vmatprep.subr.bf16.mxu0 0
        %667 = vmatpush1.bf16.xpose.msra.mxu0 0
        %668 = vmatprep.subr.bf16.mxu0 0
        %669 = vmatpush1.bf16.xpose.msra.mxu0 0
        %670 = vmatprep.subr.bf16.mxu0 0
        %671 = vmatpush1.bf16.xpose.msra.mxu0 0
        %672 = vmatprep.subr.bf16.mxu0 0
        %673 = vmatpush1.bf16.xpose.msra.mxu0 0
        %674 = vmatprep.subr.bf16.mxu0 0
        %675 = vmatpush1.bf16.xpose.msra.mxu0 0
        %676 = vmatprep.mubr.bf16.mxu0 0
        %677 = vmatmul.mubr.bf16.gmra.mrb[0].mxu0 %v642
        %v678 = vpop.f32.mrb[0].mxu0
        %v679 = vadd.f32 %v637, %v678
        %v680 = vpop.f32.mrb[0].mxu0
        %v681 = vpop.f32.mrb[0].mxu0
        %v682 = vpop.f32.mrb[0].mxu0
        %683 = vdwg.mxu0
        %v684 = vlaneseq
        %v685 = vshrl.u32 %v684, 7
        %v686 = vsub.s32 3, %v685
        %v687 = vrot.slane %v461, %v686
        %v688 = vadd.f32 %v679, %v687
        %s689 = scalar_lea.vmem %s230, 24 [#allocation2]
        %690 = vst [vmem:[%s689] sm:$0xff] %v688
        %691 = vset.pattern.permute.xlu0 4
        %692 = vperm.xlu0 %691, %v389
        %v693 = vpop.permute.xlu0 %692
        %v696 = vsel %vm309, %v467, 0
        %698 = vmatprep.subr.bf16.mxu0 0
        %699 = vmatpush1.bf16.xpose.msra.mxu0 %v403
        %700 = vmatprep.subr.bf16.mxu0 0
        %701 = vmatpush1.bf16.xpose.msra.mxu0 %v406
        %702 = vmatprep.subr.bf16.mxu0 0
        %703 = vmatpush1.bf16.xpose.msra.mxu0 %v409
        %704 = vmatprep.subr.bf16.mxu0 0
        %705 = vmatpush1.bf16.xpose.msra.mxu0 %v412
        %706 = vmatprep.subr.bf16.mxu0 0
        %707 = vmatpush1.bf16.xpose.msra.mxu0 %v415
        %708 = vmatprep.subr.bf16.mxu0 0
        %709 = vmatpush1.bf16.xpose.msra.mxu0 %v418
        %710 = vmatprep.subr.bf16.mxu0 0
        %711 = vmatpush1.bf16.xpose.msra.mxu0 %v421
        %712 = vmatprep.subr.bf16.mxu0 0
        %713 = vmatpush1.bf16.xpose.msra.mxu0 %v424
        %714 = vmatprep.subr.bf16.mxu0 0
        %715 = vmatpush1.bf16.xpose.msra.mxu0 0
        %716 = vmatprep.subr.bf16.mxu0 0
        %717 = vmatpush1.bf16.xpose.msra.mxu0 0
        %718 = vmatprep.subr.bf16.mxu0 0
        %719 = vmatpush1.bf16.xpose.msra.mxu0 0
        %720 = vmatprep.subr.bf16.mxu0 0
        %721 = vmatpush1.bf16.xpose.msra.mxu0 0
        %722 = vmatprep.subr.bf16.mxu0 0
        %723 = vmatpush1.bf16.xpose.msra.mxu0 0
        %724 = vmatprep.subr.bf16.mxu0 0
        %725 = vmatpush1.bf16.xpose.msra.mxu0 0
        %726 = vmatprep.subr.bf16.mxu0 0
        %727 = vmatpush1.bf16.xpose.msra.mxu0 0
        %728 = vmatprep.subr.bf16.mxu0 0
        %729 = vmatpush1.bf16.xpose.msra.mxu0 0
        %730 = vmatprep.mubr.bf16.mxu0 0
        %731 = vmatmul.mubr.bf16.gmra.mrb[0].mxu0 %v696
        %v732 = vpop.f32.mrb[0].mxu0
        %v733 = vadd.f32 %v693, %v732
        %v734 = vpop.f32.mrb[0].mxu0
        %v735 = vpop.f32.mrb[0].mxu0
        %v736 = vpop.f32.mrb[0].mxu0
        %737 = vdwg.mxu0
        %v738 = vlaneseq
        %v739 = vshrl.u32 %v738, 7
        %v740 = vsub.s32 4, %v739
        %v741 = vrot.slane %v461, %v740
        %v742 = vadd.f32 %v733, %v741
        %s743 = scalar_lea.vmem %s230, 32 [#allocation2]
        %744 = vst [vmem:[%s743] sm:$0xff] %v742
        %745 = vset.pattern.permute.xlu0 5
        %746 = vperm.xlu0 %745, %v389
        %v747 = vpop.permute.xlu0 %746
        %750 = vrot.lane.b32.xlu0 %v467, 96
        %v751 = vpop.permute.xlu0 %750
        %v753 = vsel %vm309, %v751, 0
        %755 = vmatprep.subr.bf16.mxu0 0
        %756 = vmatpush1.bf16.xpose.msra.mxu0 %v403
        %757 = vmatprep.subr.bf16.mxu0 0
        %758 = vmatpush1.bf16.xpose.msra.mxu0 %v406
        %759 = vmatprep.subr.bf16.mxu0 0
        %760 = vmatpush1.bf16.xpose.msra.mxu0 %v409
        %761 = vmatprep.subr.bf16.mxu0 0
        %762 = vmatpush1.bf16.xpose.msra.mxu0 %v412
        %763 = vmatprep.subr.bf16.mxu0 0
        %764 = vmatpush1.bf16.xpose.msra.mxu0 %v415
        %765 = vmatprep.subr.bf16.mxu0 0
        %766 = vmatpush1.bf16.xpose.msra.mxu0 %v418
        %767 = vmatprep.subr.bf16.mxu0 0
        %768 = vmatpush1.bf16.xpose.msra.mxu0 %v421
        %769 = vmatprep.subr.bf16.mxu0 0
        %770 = vmatpush1.bf16.xpose.msra.mxu0 %v424
        %771 = vmatprep.subr.bf16.mxu0 0
        %772 = vmatpush1.bf16.xpose.msra.mxu0 0
        %773 = vmatprep.subr.bf16.mxu0 0
        %774 = vmatpush1.bf16.xpose.msra.mxu0 0
        %775 = vmatprep.subr.bf16.mxu0 0
        %776 = vmatpush1.bf16.xpose.msra.mxu0 0
        %777 = vmatprep.subr.bf16.mxu0 0
        %778 = vmatpush1.bf16.xpose.msra.mxu0 0
        %779 = vmatprep.subr.bf16.mxu0 0
        %780 = vmatpush1.bf16.xpose.msra.mxu0 0
        %781 = vmatprep.subr.bf16.mxu0 0
        %782 = vmatpush1.bf16.xpose.msra.mxu0 0
        %783 = vmatprep.subr.bf16.mxu0 0
        %784 = vmatpush1.bf16.xpose.msra.mxu0 0
        %785 = vmatprep.subr.bf16.mxu0 0
        %786 = vmatpush1.bf16.xpose.msra.mxu0 0
        %787 = vmatprep.mubr.bf16.mxu0 0
        %788 = vmatmul.mubr.bf16.gmra.mrb[0].mxu0 %v753
        %v789 = vpop.f32.mrb[0].mxu0
        %v790 = vadd.f32 %v747, %v789
        %v791 = vpop.f32.mrb[0].mxu0
        %v792 = vpop.f32.mrb[0].mxu0
        %v793 = vpop.f32.mrb[0].mxu0
        %794 = vdwg.mxu0
        %v795 = vlaneseq
        %v796 = vshrl.u32 %v795, 7
        %v797 = vsub.s32 5, %v796
        %v798 = vrot.slane %v461, %v797
        %v799 = vadd.f32 %v790, %v798
        %s800 = scalar_lea.vmem %s230, 40 [#allocation2]
        %801 = vst [vmem:[%s800] sm:$0xff] %v799
        %802 = vset.pattern.permute.xlu0 6
        %803 = vperm.xlu0 %802, %v389
        %v804 = vpop.permute.xlu0 %803
        %806 = vrot.lane.b32.xlu0 %v467, 64
        %v807 = vpop.permute.xlu0 %806
        %v809 = vsel %vm309, %v807, 0
        %811 = vmatprep.subr.bf16.mxu0 0
        %812 = vmatpush1.bf16.xpose.msra.mxu0 %v403
        %813 = vmatprep.subr.bf16.mxu0 0
        %814 = vmatpush1.bf16.xpose.msra.mxu0 %v406
        %815 = vmatprep.subr.bf16.mxu0 0
        %816 = vmatpush1.bf16.xpose.msra.mxu0 %v409
        %817 = vmatprep.subr.bf16.mxu0 0
        %818 = vmatpush1.bf16.xpose.msra.mxu0 %v412
        %819 = vmatprep.subr.bf16.mxu0 0
        %820 = vmatpush1.bf16.xpose.msra.mxu0 %v415
        %821 = vmatprep.subr.bf16.mxu0 0
        %822 = vmatpush1.bf16.xpose.msra.mxu0 %v418
        %823 = vmatprep.subr.bf16.mxu0 0
        %824 = vmatpush1.bf16.xpose.msra.mxu0 %v421
        %825 = vmatprep.subr.bf16.mxu0 0
        %826 = vmatpush1.bf16.xpose.msra.mxu0 %v424
        %827 = vmatprep.subr.bf16.mxu0 0
        %828 = vmatpush1.bf16.xpose.msra.mxu0 0
        %829 = vmatprep.subr.bf16.mxu0 0
        %830 = vmatpush1.bf16.xpose.msra.mxu0 0
        %831 = vmatprep.subr.bf16.mxu0 0
        %832 = vmatpush1.bf16.xpose.msra.mxu0 0
        %833 = vmatprep.subr.bf16.mxu0 0
        %834 = vmatpush1.bf16.xpose.msra.mxu0 0
        %835 = vmatprep.subr.bf16.mxu0 0
        %836 = vmatpush1.bf16.xpose.msra.mxu0 0
        %837 = vmatprep.subr.bf16.mxu0 0
        %838 = vmatpush1.bf16.xpose.msra.mxu0 0
        %839 = vmatprep.subr.bf16.mxu0 0
        %840 = vmatpush1.bf16.xpose.msra.mxu0 0
        %841 = vmatprep.subr.bf16.mxu0 0
        %842 = vmatpush1.bf16.xpose.msra.mxu0 0
        %843 = vmatprep.mubr.bf16.mxu0 0
        %844 = vmatmul.mubr.bf16.gmra.mrb[0].mxu0 %v809
        %v845 = vpop.f32.mrb[0].mxu0
        %v846 = vadd.f32 %v804, %v845
        %v847 = vpop.f32.mrb[0].mxu0
        %v848 = vpop.f32.mrb[0].mxu0
        %v849 = vpop.f32.mrb[0].mxu0
        %850 = vdwg.mxu0
        %v851 = vlaneseq
        %v852 = vshrl.u32 %v851, 7
        %v853 = vsub.s32 6, %v852
        %v854 = vrot.slane %v461, %v853
        %v855 = vadd.f32 %v846, %v854
        %s856 = scalar_lea.vmem %s230, 48 [#allocation2]
        %857 = vst [vmem:[%s856] sm:$0xff] %v855
        %858 = vset.pattern.permute.xlu0 7
        %859 = vperm.xlu0 %858, %v389
        %v860 = vpop.permute.xlu0 %859
        %862 = vrot.lane.b32.xlu0 %v467, 32
        %v863 = vpop.permute.xlu0 %862
        %v865 = vsel %vm309, %v863, 0
        %867 = vmatprep.subr.bf16.mxu0 0
        %868 = vmatpush1.bf16.xpose.msra.mxu0 %v403
        %869 = vmatprep.subr.bf16.mxu0 0
        %870 = vmatpush1.bf16.xpose.msra.mxu0 %v406
        %871 = vmatprep.subr.bf16.mxu0 0
        %872 = vmatpush1.bf16.xpose.msra.mxu0 %v409
        %873 = vmatprep.subr.bf16.mxu0 0
        %874 = vmatpush1.bf16.xpose.msra.mxu0 %v412
        %875 = vmatprep.subr.bf16.mxu0 0
        %876 = vmatpush1.bf16.xpose.msra.mxu0 %v415
        %877 = vmatprep.subr.bf16.mxu0 0
        %878 = vmatpush1.bf16.xpose.msra.mxu0 %v418
        %879 = vmatprep.subr.bf16.mxu0 0
        %880 = vmatpush1.bf16.xpose.msra.mxu0 %v421
        %881 = vmatprep.subr.bf16.mxu0 0
        %882 = vmatpush1.bf16.xpose.msra.mxu0 %v424
        %883 = vmatprep.subr.bf16.mxu0 0
        %884 = vmatpush1.bf16.xpose.msra.mxu0 0
        %885 = vmatprep.subr.bf16.mxu0 0
        %886 = vmatpush1.bf16.xpose.msra.mxu0 0
        %887 = vmatprep.subr.bf16.mxu0 0
        %888 = vmatpush1.bf16.xpose.msra.mxu0 0
        %889 = vmatprep.subr.bf16.mxu0 0
        %890 = vmatpush1.bf16.xpose.msra.mxu0 0
        %891 = vmatprep.subr.bf16.mxu0 0
        %892 = vmatpush1.bf16.xpose.msra.mxu0 0
        %893 = vmatprep.subr.bf16.mxu0 0
        %894 = vmatpush1.bf16.xpose.msra.mxu0 0
        %895 = vmatprep.subr.bf16.mxu0 0
        %896 = vmatpush1.bf16.xpose.msra.mxu0 0
        %897 = vmatprep.subr.bf16.mxu0 0
        %898 = vmatpush1.bf16.xpose.msra.mxu0 0
        %899 = vmatprep.mubr.bf16.mxu0 0
        %900 = vmatmul.mubr.bf16.gmra.mrb[0].mxu0 %v865
        %v901 = vpop.f32.mrb[0].mxu0
        %v902 = vadd.f32 %v860, %v901
        %v903 = vpop.f32.mrb[0].mxu0
        %v904 = vpop.f32.mrb[0].mxu0
        %v905 = vpop.f32.mrb[0].mxu0
        %906 = vdwg.mxu0
        %v907 = vlaneseq
        %v908 = vshrl.u32 %v907, 7
        %v909 = vsub.s32 7, %v908
        %v910 = vrot.slane %v461, %v909
        %v911 = vadd.f32 %v902, %v910
        %s912 = scalar_lea.vmem %s230, 56 [#allocation2]
        %913 = vst [vmem:[%s912] sm:$0xff] %v911
        %s914 = sand.u32 %s142, 1
        %s915 = scalar_lea.sflag [#allocation3], %s914
        %s916 = sand.u32 %s142, 1
        %s917 = smul.addr %s916, 64
        %s918 = scalar_lea.vmem [#allocation2], %s917
        // Predicated region
        $region41: #{tpu_custom_call.1} parent=39 // pred_check
          %p919 = pneg %p152
        $region42: #{tpu_custom_call.1} parent=39 // pred_check_branch
          %921 = sbr.rel (%p919) target = $region44
        $region43: #{tpu_custom_call.1} parent=39 // pred_region
          %s923 = ssub.s32 1024, 1024
          %924 = vsyncadd %s915, %s923
          %s925 = smul.addr %s19, 8
          %s926 = smul.addr %s925, 128
          %s927 = scalar_lea.hbm %s5, %s926
          %s928 = sshll.u32 %s918, 4
          %s929 = int_to_ptr.vmem [resolvable:$true] %s928
          %934 = dma.vmem_to_hbm [thread:$0]  %s929, 1024, %s927, %s915, 128, 128, 8
        $region44: #{tpu_custom_call.1} parent=39 // pred_fallthru
          _
      $region40: #{tpu_custom_call.1} parent=5 // pred_fallthru
        _
      %p935 = scmp.le.s32.totalorder 2, %s14
      // Predicated region
      $region45: #{tpu_custom_call.1} parent=5 // pred_check
        %p936 = pneg %p935
      $region46: #{tpu_custom_call.1} parent=5 // pred_check_branch
        %938 = sbr.rel (%p936) target = $region48
      $region47: #{tpu_custom_call.1} parent=5 // pred_region
        %s939 = ssub.s32 %s14, 2
        // Predicated region
        $region49: #{tpu_custom_call.1} parent=47 // pred_check
          %p940 = pneg %p158
        $region50: #{tpu_custom_call.1} parent=47 // pred_check_branch
          %942 = sbr.rel (%p940) target = $region52
        $region51: #{tpu_custom_call.1} parent=47 // pred_region
          %s943 = sand.u32 %s143, 1
          %s944 = scalar_lea.sflag [#allocation3], %s943
          %s945 = sand.u32 %s143, 1
          %s946 = smul.addr %s945, 64
          %s947 = scalar_lea.vmem [#allocation2], %s946
          %948 = dma.done %s944, 1024
        $region52: #{tpu_custom_call.1} parent=47 // pred_fallthru
          _
      $region48: #{tpu_custom_call.1} parent=5 // pred_fallthru
        _
    $region6: #{tpu_custom_call.1} parent=1 // loop_footer
      %s18 = sadd.s32 1, %s14
    $region7: #{tpu_custom_call.1} parent=1 // loop_footer_branch
      %13 = sbr.rel target = $region3
    $region8: #{tpu_custom_call.1} parent=1 // loop_exit
      _
    %949 = vsyncpa [#allocation3], 1
    %s950 = scalar_lea.sflag [#allocation3], 1
    %951 = vsyncpa %s950, 1

</llo_original>
